<compile_context>
chip_gen: v5e
topology: v5e:2x2
jax: 0.10.0
libtpu: 0.0.40
codegen_flags: <defaults>
</compile_context>

<pallas_src>
import functools

import jax
import jax.numpy as jnp
from jax.experimental import pallas as pl
from jax.experimental.pallas import tpu as pltpu


def _is_pow2(v):
    return v > 0 and (v & (v - 1)) == 0


def _dwconv_kernel(H, W, hw_pad, x_ref, w_ref, out_ref, slab_ref):
    """One grid step = `nb` images stacked along the lane axis.

    x_ref:    (C_in, L) input, channel-major, L = nb * hw_pad
    w_ref:    (C_out, 9*C_in + 1) folded depthwise*pointwise*BN weight (+bias col), bf16
    out_ref:  (C_out, L)
    slab_ref: (9*C_in + 1, L) f32 scratch: 9 rolled/masked copies + ones row
    """
    c_in, L = x_ref.shape
    x = x_ref[...].astype(jnp.float32)

    # Per-image coordinates (masks are per image so rolls never leak across
    # image boundaries in the lane-stacked layout).
    pos = jax.lax.broadcasted_iota(jnp.int32, (1, L), 1)
    q = (pos & (hw_pad - 1)) if _is_pow2(hw_pad) else (pos % hw_pad)
    if _is_pow2(W):
        col = q & (W - 1)
        row = q >> (W.bit_length() - 1)
    else:
        col = q % W
        row = q // W

    # Hoisted edge masks (computed once, AND'ed per tap).
    m_row_lo = row >= 1         # needed when dy == -1
    m_row_hi = row < (H - 1)    # needed when dy == +1
    m_col_lo = col >= 1         # needed when dx == -1
    m_col_hi = col < (W - 1)    # needed when dx == +1

    # Constant-1 row matching the bias column folded into w_ref.
    # (Written every step: scratch is per-core, and steps may split across TCs.)
    slab_ref[pl.ds(9 * c_in, 1), :] = jnp.ones((1, L), slab_ref.dtype)

    # 9 taps of the zero-padded 'same' 3x3 depthwise conv realized as lane
    # rolls (XLU) + masks (VPU), written straight into the VMEM slab so vreg
    # live ranges stay bounded even at large C_in.
    for kh in range(3):
        for kw in range(3):
            dy, dx = kh - 1, kw - 1
            shift = dy * W + dx
            if shift % L == 0:
                shifted = x
            else:
                # shifted[p] == x[p + shift]; wrapped values are masked below.
                shifted = pltpu.roll(x, (-shift) % L, 1)
            cond = None
            if dy < 0:
                cond = m_row_lo
            elif dy > 0:
                cond = m_row_hi
            if dx < 0:
                cond = m_col_lo if cond is None else (cond & m_col_lo)
            elif dx > 0:
                cond = m_col_hi if cond is None else (cond & m_col_hi)
            if cond is not None:
                shifted = jnp.where(cond, shifted, 0.0)
            k = kh * 3 + kw
            slab_ref[pl.ds(k * c_in, c_in), :] = shifted

    # One MXU matmul does depthwise-sum + pointwise 1x1 + BN scale + bias.
    # bf16 operands (fast path on every MXU generation), f32 accumulate.
    slab = slab_ref[...].astype(jnp.bfloat16)
    y = jnp.dot(w_ref[...], slab, preferred_element_type=jnp.float32)
    out_ref[...] = y.astype(out_ref.dtype)


def dwconv(x, dw_w, dw_b, pw_w, pw_b, gamma, beta, mean, var, eps=1e-5):
    """DWConv forward: depthwise 3x3 -> pointwise 1x1 -> BatchNorm (inference)."""
    N, C_in, H, W = x.shape
    C_out = pw_w.shape[0]
    HW = H * W
    f32 = jnp.float32

    # --- fold pointwise conv + both conv biases + BN (inference mode) -------
    inv_std = (gamma / jnp.sqrt(var + eps)).astype(f32)
    pw2 = pw_w.reshape(C_out, C_in).astype(f32)
    w_eff = pw2 * inv_std[:, None]                               # (C_out, C_in)
    b_eff = (pw2 @ dw_b.astype(f32) + pw_b.astype(f32)
             - mean.astype(f32)) * inv_std + beta.astype(f32)    # (C_out,)
    dw_flat = dw_w.reshape(C_in, 9).astype(f32)                  # (C_in, 9)

    # Fold the 9 depthwise taps into the channel-mixing weight:
    #   W_stack[o, k*C_in + c] = w_eff[o, c] * dw_flat[c, k]
    w_stack = (w_eff[:, None, :] * dw_flat.T[None, :, :]).reshape(C_out, 9 * C_in)
    # Append the folded bias as an extra column (ones row supplied in-kernel).
    w_full = jnp.concatenate([w_stack, b_eff[:, None]], axis=1)  # (C_out, 9*C_in+1)
    w_full = w_full.astype(jnp.bfloat16)

    # --- layout plumbing: lane-dense, batch stacked along the lane axis -----
    hw_pad = ((HW + 127) // 128) * 128       # unmasked lane-dense loads/stores
    x_flat = x.reshape(N, C_in, HW)
    if hw_pad != HW:
        x_flat = jnp.pad(x_flat, ((0, 0), (0, 0), (0, hw_pad - HW)))

    # Images per grid step: size the x block toward ~1 MB, but keep >=2 grid
    # steps so both TensorCores get work on v7x.
    bytes_per_img = C_in * hw_pad * 4
    nb = max(1, min((N + 1) // 2, (1 << 20) // bytes_per_img))
    n_steps = -(-N // nb)
    n_pad = n_steps * nb
    if n_pad != N:
        x_flat = jnp.pad(x_flat, ((0, n_pad - N), (0, 0), (0, 0)))
    x_cm = x_flat.transpose(1, 0, 2).reshape(C_in, n_pad * hw_pad)

    L = nb * hw_pad
    kernel = functools.partial(_dwconv_kernel, H, W, hw_pad)
    out_cm = pl.pallas_call(
        kernel,
        out_shape=jax.ShapeDtypeStruct((C_out, n_pad * hw_pad), x.dtype),
        grid=(n_steps,),
        in_specs=[
            pl.BlockSpec((C_in, L), lambda i: (0, i)),              # nb images
            pl.BlockSpec((C_out, 9 * C_in + 1), lambda i: (0, 0)),  # folded weight
        ],
        out_specs=pl.BlockSpec((C_out, L), lambda i: (0, i)),
        scratch_shapes=[pltpu.VMEM((9 * C_in + 1, L), jnp.float32)],
        compiler_params=pltpu.CompilerParams(
            dimension_semantics=("parallel",)),
    )(x_cm, w_full)

    out = out_cm.reshape(C_out, n_pad, hw_pad)[:, :N, :HW]
    return out.transpose(1, 0, 2).reshape(N, C_out, H, W)


# ---------------- pure-JAX reference (for correctness check) ----------------
def _dwconv_ref(x, dw_w, dw_b, pw_w, pw_b, gamma, beta, mean, var, eps=1e-5):
    C_in = x.shape[1]
    hp = jax.lax.Precision.HIGHEST
    y = jax.lax.conv_general_dilated(
        x, dw_w, window_strides=(1, 1), padding=((1, 1), (1, 1)),
        dimension_numbers=("NCHW", "OIHW", "NCHW"),
        feature_group_count=C_in, precision=hp)
    y = y + dw_b[None, :, None, None]
    y = jax.lax.conv_general_dilated(
        y, pw_w, window_strides=(1, 1), padding=((0, 0), (0, 0)),
        dimension_numbers=("NCHW", "OIHW", "NCHW"), precision=hp)
    y = y + pw_b[None, :, None, None]
    inv = gamma / jnp.sqrt(var + eps)
    return ((y - mean[None, :, None, None]) * inv[None, :, None, None]
            + beta[None, :, None, None])


if __name__ == "__main__":
    key = jax.random.PRNGKey(0)
    ks = jax.random.split(key, 9)
    N, C_IN, C_OUT, H, W = 2, 4, 8, 16, 16

    x = jax.random.normal(ks[0], (N, C_IN, H, W), jnp.float32)
    params = dict(
        dw_w=0.2 * jax.random.normal(ks[1], (C_IN, 1, 3, 3), jnp.float32),
        dw_b=0.1 * jax.random.normal(ks[2], (C_IN,), jnp.float32),
        pw_w=0.2 * jax.random.normal(ks[3], (C_OUT, C_IN, 1, 1), jnp.float32),
        pw_b=0.1 * jax.random.normal(ks[4], (C_OUT,), jnp.float32),
        gamma=1.0 + 0.1 * jax.random.normal(ks[5], (C_OUT,), jnp.float32),
        beta=0.1 * jax.random.normal(ks[6], (C_OUT,), jnp.float32),
        mean=0.1 * jax.random.normal(ks[7], (C_OUT,), jnp.float32),
        var=1.0 + 0.2 * jnp.abs(jax.random.normal(ks[8], (C_OUT,), jnp.float32)),
    )

    out = dwconv(x, **params)
    out = jax.block_until_ready(out)

    ref = _dwconv_ref(x, **params)
    assert out.shape == (N, C_OUT, H, W)
    # bf16 MXU operands with f32 accumulation over a 37-term contraction:
    # observed error is O(1e-3); structural errors would be O(0.1-1).
    max_diff = float(jnp.max(jnp.abs(out - ref)))
    assert jnp.allclose(out, ref, rtol=2e-2, atol=2e-2), f"max diff {max_diff}"
    print("KERNEL_OK")
</pallas_src>

<mosaic_0001>
module attributes {stable_mosaic.version = 11 : i64} {
  func.func @_dwconv_kernel(%arg0: i32, %arg1: memref<4x256xf32, #tpu.memory_space<vmem>>, %arg2: memref<8x37xbf16, #tpu.memory_space<vmem>>, %arg3: memref<8x256xf32, #tpu.memory_space<vmem>>, %arg4: memref<37x256xf32, #tpu.memory_space<vmem>>) attributes {dimension_semantics = [#tpu.dimension_semantics<parallel>], iteration_bounds = array<i64: 2>, scalar_prefetch = 0 : i64, scratch_operands = 1 : i64, tpu.core_type = #tpu.core_type<tc>, window_params = [{transform_indices = @transform_0, window_bounds = array<i64: 4, 256>}, {pipeline_mode = #tpu.pipeline_mode<synchronous>, transform_indices = @transform_1, window_bounds = array<i64: 8, 37>}, {transform_indices = @transform_2, window_bounds = array<i64: 8, 256>}]} {
    %c0 = arith.constant 0 : index
    %c0_0 = arith.constant 0 : index
    %0 = vector.load %arg1[%c0, %c0_0] : memref<4x256xf32, #tpu.memory_space<vmem>>, vector<4x256xf32>
    %1 = tpu.iota {dimensions = array<i32: 1>} : vector<1x256xi32>
    %c255_i32 = arith.constant 255 : i32
    %2 = vector.broadcast %c255_i32 : i32 to vector<1x256xi32>
    %3 = arith.andi %1, %2 : vector<1x256xi32>
    %c15_i32 = arith.constant 15 : i32
    %4 = vector.broadcast %c15_i32 : i32 to vector<1x256xi32>
    %5 = arith.andi %3, %4 : vector<1x256xi32>
    %c4_i32 = arith.constant 4 : i32
    %6 = vector.broadcast %c4_i32 : i32 to vector<1x256xi32>
    %7 = arith.shrsi %3, %6 : vector<1x256xi32>
    %c1_i32 = arith.constant 1 : i32
    %8 = vector.broadcast %c1_i32 : i32 to vector<1x256xi32>
    %9 = arith.cmpi sge, %7, %8 : vector<1x256xi32>
    %c15_i32_1 = arith.constant 15 : i32
    %10 = vector.broadcast %c15_i32_1 : i32 to vector<1x256xi32>
    %11 = arith.cmpi slt, %7, %10 : vector<1x256xi32>
    %c1_i32_2 = arith.constant 1 : i32
    %12 = vector.broadcast %c1_i32_2 : i32 to vector<1x256xi32>
    %13 = arith.cmpi sge, %5, %12 : vector<1x256xi32>
    %c15_i32_3 = arith.constant 15 : i32
    %14 = vector.broadcast %c15_i32_3 : i32 to vector<1x256xi32>
    %15 = arith.cmpi slt, %5, %14 : vector<1x256xi32>
    %cst = arith.constant 1.000000e+00 : f32
    %16 = vector.broadcast %cst : f32 to vector<1x256xf32>
    %c36 = arith.constant 36 : index
    %c0_4 = arith.constant 0 : index
    %17 = vector.load %arg4[%c36, %c0_4] : memref<37x256xf32, #tpu.memory_space<vmem>>, vector<1x256xf32>
    tpu.vector_store %arg4[%c36, %c0_4], %16 {strides = array<i32>} : memref<37x256xf32, #tpu.memory_space<vmem>>, vector<1x256xf32>,
    %c17_i32 = arith.constant 17 : i32
    %18 = tpu.dynamic_rotate %0 by %c17_i32 dim 1 : vector<4x256xf32>, i32 -> vector<4x256xf32>
    %19 = arith.andi %9, %13 : vector<1x256xi1>
    %cst_5 = arith.constant 0.000000e+00 : f32
    %20 = vector.shape_cast %19 : vector<1x256xi1> to vector<1x256xi1>
    %21 = vector.broadcast %20 : vector<1x256xi1> to vector<4x256xi1>
    %22 = vector.broadcast %cst_5 : f32 to vector<4x256xf32>
    %23 = arith.select %21, %18, %22 : vector<4x256xi1>, vector<4x256xf32>
    %c0_6 = arith.constant 0 : index
    %c0_7 = arith.constant 0 : index
    %24 = vector.load %arg4[%c0_6, %c0_7] : memref<37x256xf32, #tpu.memory_space<vmem>>, vector<4x256xf32>
    tpu.vector_store %arg4[%c0_6, %c0_7], %23 {strides = array<i32>} : memref<37x256xf32, #tpu.memory_space<vmem>>, vector<4x256xf32>,
    %c16_i32 = arith.constant 16 : i32
    %25 = tpu.dynamic_rotate %0 by %c16_i32 dim 1 : vector<4x256xf32>, i32 -> vector<4x256xf32>
    %cst_8 = arith.constant 0.000000e+00 : f32
    %26 = vector.shape_cast %9 : vector<1x256xi1> to vector<1x256xi1>
    %27 = vector.broadcast %26 : vector<1x256xi1> to vector<4x256xi1>
    %28 = vector.broadcast %cst_8 : f32 to vector<4x256xf32>
    %29 = arith.select %27, %25, %28 : vector<4x256xi1>, vector<4x256xf32>
    %c4 = arith.constant 4 : index
    %c0_9 = arith.constant 0 : index
    %30 = vector.load %arg4[%c4, %c0_9] : memref<37x256xf32, #tpu.memory_space<vmem>>, vector<4x256xf32>
    tpu.vector_store %arg4[%c4, %c0_9], %29 {strides = array<i32>} : memref<37x256xf32, #tpu.memory_space<vmem>>, vector<4x256xf32>,
    %c15_i32_10 = arith.constant 15 : i32
    %31 = tpu.dynamic_rotate %0 by %c15_i32_10 dim 1 : vector<4x256xf32>, i32 -> vector<4x256xf32>
    %32 = arith.andi %9, %15 : vector<1x256xi1>
    %cst_11 = arith.constant 0.000000e+00 : f32
    %33 = vector.shape_cast %32 : vector<1x256xi1> to vector<1x256xi1>
    %34 = vector.broadcast %33 : vector<1x256xi1> to vector<4x256xi1>
    %35 = vector.broadcast %cst_11 : f32 to vector<4x256xf32>
    %36 = arith.select %34, %31, %35 : vector<4x256xi1>, vector<4x256xf32>
    %c8 = arith.constant 8 : index
    %c0_12 = arith.constant 0 : index
    %37 = vector.load %arg4[%c8, %c0_12] : memref<37x256xf32, #tpu.memory_space<vmem>>, vector<4x256xf32>
    tpu.vector_store %arg4[%c8, %c0_12], %36 {strides = array<i32>} : memref<37x256xf32, #tpu.memory_space<vmem>>, vector<4x256xf32>,
    %c1_i32_13 = arith.constant 1 : i32
    %38 = tpu.dynamic_rotate %0 by %c1_i32_13 dim 1 : vector<4x256xf32>, i32 -> vector<4x256xf32>
    %cst_14 = arith.constant 0.000000e+00 : f32
    %39 = vector.shape_cast %13 : vector<1x256xi1> to vector<1x256xi1>
    %40 = vector.broadcast %39 : vector<1x256xi1> to vector<4x256xi1>
    %41 = vector.broadcast %cst_14 : f32 to vector<4x256xf32>
    %42 = arith.select %40, %38, %41 : vector<4x256xi1>, vector<4x256xf32>
    %c12 = arith.constant 12 : index
    %c0_15 = arith.constant 0 : index
    %43 = vector.load %arg4[%c12, %c0_15] : memref<37x256xf32, #tpu.memory_space<vmem>>, vector<4x256xf32>
    tpu.vector_store %arg4[%c12, %c0_15], %42 {strides = array<i32>} : memref<37x256xf32, #tpu.memory_space<vmem>>, vector<4x256xf32>,
    %c16 = arith.constant 16 : index
    %c0_16 = arith.constant 0 : index
    %44 = vector.load %arg4[%c16, %c0_16] : memref<37x256xf32, #tpu.memory_space<vmem>>, vector<4x256xf32>
    tpu.vector_store %arg4[%c16, %c0_16], %0 {strides = array<i32>} : memref<37x256xf32, #tpu.memory_space<vmem>>, vector<4x256xf32>,
    %c255_i32_17 = arith.constant 255 : i32
    %45 = tpu.dynamic_rotate %0 by %c255_i32_17 dim 1 : vector<4x256xf32>, i32 -> vector<4x256xf32>
    %cst_18 = arith.constant 0.000000e+00 : f32
    %46 = vector.shape_cast %15 : vector<1x256xi1> to vector<1x256xi1>
    %47 = vector.broadcast %46 : vector<1x256xi1> to vector<4x256xi1>
    %48 = vector.broadcast %cst_18 : f32 to vector<4x256xf32>
    %49 = arith.select %47, %45, %48 : vector<4x256xi1>, vector<4x256xf32>
    %c20 = arith.constant 20 : index
    %c0_19 = arith.constant 0 : index
    %50 = vector.load %arg4[%c20, %c0_19] : memref<37x256xf32, #tpu.memory_space<vmem>>, vector<4x256xf32>
    tpu.vector_store %arg4[%c20, %c0_19], %49 {strides = array<i32>} : memref<37x256xf32, #tpu.memory_space<vmem>>, vector<4x256xf32>,
    %c241_i32 = arith.constant 241 : i32
    %51 = tpu.dynamic_rotate %0 by %c241_i32 dim 1 : vector<4x256xf32>, i32 -> vector<4x256xf32>
    %52 = arith.andi %11, %13 : vector<1x256xi1>
    %cst_20 = arith.constant 0.000000e+00 : f32
    %53 = vector.shape_cast %52 : vector<1x256xi1> to vector<1x256xi1>
    %54 = vector.broadcast %53 : vector<1x256xi1> to vector<4x256xi1>
    %55 = vector.broadcast %cst_20 : f32 to vector<4x256xf32>
    %56 = arith.select %54, %51, %55 : vector<4x256xi1>, vector<4x256xf32>
    %c24 = arith.constant 24 : index
    %c0_21 = arith.constant 0 : index
    %57 = vector.load %arg4[%c24, %c0_21] : memref<37x256xf32, #tpu.memory_space<vmem>>, vector<4x256xf32>
    tpu.vector_store %arg4[%c24, %c0_21], %56 {strides = array<i32>} : memref<37x256xf32, #tpu.memory_space<vmem>>, vector<4x256xf32>,
    %c240_i32 = arith.constant 240 : i32
    %58 = tpu.dynamic_rotate %0 by %c240_i32 dim 1 : vector<4x256xf32>, i32 -> vector<4x256xf32>
    %cst_22 = arith.constant 0.000000e+00 : f32
    %59 = vector.shape_cast %11 : vector<1x256xi1> to vector<1x256xi1>
    %60 = vector.broadcast %59 : vector<1x256xi1> to vector<4x256xi1>
    %61 = vector.broadcast %cst_22 : f32 to vector<4x256xf32>
    %62 = arith.select %60, %58, %61 : vector<4x256xi1>, vector<4x256xf32>
    %c28 = arith.constant 28 : index
    %c0_23 = arith.constant 0 : index
    %63 = vector.load %arg4[%c28, %c0_23] : memref<37x256xf32, #tpu.memory_space<vmem>>, vector<4x256xf32>
    tpu.vector_store %arg4[%c28, %c0_23], %62 {strides = array<i32>} : memref<37x256xf32, #tpu.memory_space<vmem>>, vector<4x256xf32>,
    %c239_i32 = arith.constant 239 : i32
    %64 = tpu.dynamic_rotate %0 by %c239_i32 dim 1 : vector<4x256xf32>, i32 -> vector<4x256xf32>
    %65 = arith.andi %11, %15 : vector<1x256xi1>
    %cst_24 = arith.constant 0.000000e+00 : f32
    %66 = vector.shape_cast %65 : vector<1x256xi1> to vector<1x256xi1>
    %67 = vector.broadcast %66 : vector<1x256xi1> to vector<4x256xi1>
    %68 = vector.broadcast %cst_24 : f32 to vector<4x256xf32>
    %69 = arith.select %67, %64, %68 : vector<4x256xi1>, vector<4x256xf32>
    %c32 = arith.constant 32 : index
    %c0_25 = arith.constant 0 : index
    %70 = vector.load %arg4[%c32, %c0_25] : memref<37x256xf32, #tpu.memory_space<vmem>>, vector<4x256xf32>
    tpu.vector_store %arg4[%c32, %c0_25], %69 {strides = array<i32>} : memref<37x256xf32, #tpu.memory_space<vmem>>, vector<4x256xf32>,
    %c0_26 = arith.constant 0 : index
    %c0_27 = arith.constant 0 : index
    %71 = vector.load %arg4[%c0_26, %c0_27] : memref<37x256xf32, #tpu.memory_space<vmem>>, vector<37x256xf32>
    %72 = arith.truncf %71 : vector<37x256xf32> to vector<37x256xbf16>
    %c0_28 = arith.constant 0 : index
    %c0_29 = arith.constant 0 : index
    %73 = vector.load %arg2[%c0_28, %c0_29] : memref<8x37xbf16, #tpu.memory_space<vmem>>, vector<8x37xbf16>
    %cst_30 = arith.constant dense<0.000000e+00> : vector<8x256xf32>
    %74 = tpu.matmul %73, %72, %cst_30 {dimension_numbers = #tpu.dot_dimension_numbers<[1], [0], [0], [1], [0, 0, 1, 1], [], []>} : vector<8x37xbf16>, vector<37x256xbf16>, vector<8x256xf32> -> vector<8x256xf32>
    %c0_31 = arith.constant 0 : index
    %c0_32 = arith.constant 0 : index
    %75 = vector.load %arg3[%c0_31, %c0_32] : memref<8x256xf32, #tpu.memory_space<vmem>>, vector<8x256xf32>
    tpu.vector_store %arg3[%c0_31, %c0_32], %74 {strides = array<i32>} : memref<8x256xf32, #tpu.memory_space<vmem>>, vector<8x256xf32>,
    return
  }
  func.func @transform_0(%arg0: i32) -> (i32, i32) {
    %c0_i32 = arith.constant 0 : i32
    %c0_i32_0 = arith.constant 0 : i32
    return %c0_i32, %arg0 : i32, i32
  }
  func.func @transform_1(%arg0: i32) -> (i32, i32) {
    %c0_i32 = arith.constant 0 : i32
    %c0_i32_0 = arith.constant 0 : i32
    %c0_i32_1 = arith.constant 0 : i32
    return %c0_i32, %c0_i32_0 : i32, i32
  }
  func.func @transform_2(%arg0: i32) -> (i32, i32) {
    %c0_i32 = arith.constant 0 : i32
    %c0_i32_0 = arith.constant 0 : i32
    return %c0_i32, %arg0 : i32, i32
  }
}

</mosaic_0001>

<llo_original>
// kernel: tpu_custom_call.1
$region0: #{tpu_custom_call.1}
  #allocation0 [shape = 'u32[]', space=smem, size = 0x4, offset = 0x4, fixed_abs, tag = 'smem constant byte address 0x4 - core index']
  #allocation1 [shape = 'u32[72,128]{1,0:T(1,128)}', space=vmem, size = 0x9000, scoped, tag = 'internal scratch']
  #allocation2 [shape = 'f32[37,256]{1,0:T(8,128)}', space=vmem, size = 0xa000, scoped, tag = 'scratch operand']
  %s0 = inlined_call_operand.hbm [shape: f32[4,512], index: 0, kind: input, shape index: {}]
  %s1 = inlined_call_operand.hbm [shape: bf16[8,37], index: 1, kind: input, shape index: {}]
  %s2 = inlined_call_operand.hbm [shape: f32[8,512], index: 2, kind: output, shape index: {}]
  %s3 = sld [smem:[#allocation0]]
  $region49: #{tpu_custom_call.1} parent=0
    _
  %s5 = ssub.s32 1, %s3
  %s6 = scalar_select 0, %s5, %s3
  $region1: #{tpu_custom_call.1} parent=0
    #allocation3 [shape = 'u8[8192]{0}', space=vmem, size = 0x2000, scoped, tag = 'input window, operand 0']
    #allocation4 [shape = 's32[2]{0}', space=sflag, size = 0x8, scoped, tag = 'scoped memory for tpu_custom_call.1']
    #allocation5 [shape = 's32[2]{0}', space=sflag, size = 0x8, scoped, tag = 'scoped memory for tpu_custom_call.1']
    #allocation6 [shape = 'u8[2048]{0}', space=vmem, size = 0x800, scoped, tag = 'input window, operand 1, single buffered']
    #allocation7 [shape = 's32[1]{0}', space=sflag, size = 0x4, scoped, tag = 'scoped memory for tpu_custom_call.1']
    #allocation8 [shape = 'u8[16384]{0}', space=vmem, size = 0x4000, scoped, tag = 'output window, operand 0']
    %7 = vsyncpa [#allocation4], 0
    %s8 = scalar_lea.sflag [#allocation4], 1
    %9 = vsyncpa %s8, 0
    %10 = vsyncpa [#allocation7], 0
    %11 = vsyncpa [#allocation5], 0
    %s12 = scalar_lea.sflag [#allocation5], 1
    %13 = vsyncpa %s12, 0
    loop: start=0, step=1, limit=4
    $region2: #{tpu_custom_call.1} parent=1 // loop_pre_header
      _
    $region3: #{tpu_custom_call.1} parent=1 // loop_header
      %s15 = sphi 0, %s19
      %p16 = scmp.ge.s32.totalorder %s15, 4
      %s25 = sphi 0, %s27
      %s28 = sphi 0, %s25
      %s29 = sphi 0, %s28
      %s45 = sphi 0, %s29
      %s49 = sphi 0, %s49
      %s51 = sphi 0, %s49
      %s52 = sphi 0, %s51
      %s66 = sphi 0, %s52
      %s72 = sphi 0, %s74
      %s75 = sphi 0, %s72
      %s76 = sphi 0, %s75
      %s92 = sphi 0, %s76
    $region4: #{tpu_custom_call.1} parent=1 // loop_header_branch
      %18 = sbr.rel (%p16) target = $region8
    $region5: #{tpu_custom_call.1} parent=1 // loop_body
      %s20 = ssub.s32 %s15, 1
      %s21 = ssub.s32 %s15, 2
      %s22 = sadd.s32 %s15, 1
      %s23 = ssub.s32 %s15, %s22
      %p24 = scmp.eq.s32.totalorder %s23, 0
      %s26 = sadd.s32 %s25, 1
      %s27 = scalar_select %p24, %s25, %s26
      %p30 = pneg %p24
      %p31 = scmp.eq.s32.totalorder %s15, 1
      %p32 = por %p30, %p31
      %p33 = scmp.ne.s32.totalorder %s25, %s28
      %p34 = scmp.eq.s32.totalorder %s15, 0
      %p35 = por %p33, %p34
      %p36 = scmp.ne.s32.totalorder %s25, %s28
      %p37 = scmp.eq.s32.totalorder %s20, 1
      %p38 = por %p36, %p37
      %p39 = scmp.ne.s32.totalorder %s28, %s29
      %p40 = scmp.eq.s32.totalorder %s20, 0
      %p41 = por %p39, %p40
      %p42 = scmp.ne.s32.totalorder %s28, %s29
      %p43 = scmp.eq.s32.totalorder %s21, 1
      %p44 = por %p42, %p43
      %p46 = scmp.ne.s32.totalorder %s29, %s45
      %p47 = scmp.eq.s32.totalorder %s21, 0
      %p48 = por %p46, %p47
      %s50 = sadd.s32 %s49, 1
      %p53 = scmp.eq.s32.totalorder %s15, 1
      %p54 = scmp.ne.s32.totalorder %s49, %s51
      %p55 = scmp.eq.s32.totalorder %s15, 0
      %p56 = por %p54, %p55
      %p57 = scmp.ne.s32.totalorder %s49, %s51
      %p58 = scmp.eq.s32.totalorder %s20, 1
      %p59 = por %p57, %p58
      %p60 = scmp.ne.s32.totalorder %s51, %s52
      %p61 = scmp.eq.s32.totalorder %s20, 0
      %p62 = por %p60, %p61
      %p63 = scmp.ne.s32.totalorder %s51, %s52
      %p64 = scmp.eq.s32.totalorder %s21, 1
      %p65 = por %p63, %p64
      %p67 = scmp.ne.s32.totalorder %s52, %s66
      %p68 = scmp.eq.s32.totalorder %s21, 0
      %p69 = por %p67, %p68
      %s70 = ssub.s32 %s15, %s22
      %p71 = scmp.eq.s32.totalorder %s70, 0
      %s73 = sadd.s32 %s72, 1
      %s74 = scalar_select %p71, %s72, %s73
      %p77 = pneg %p71
      %p78 = scmp.eq.s32.totalorder %s15, 1
      %p79 = por %p77, %p78
      %p80 = scmp.ne.s32.totalorder %s72, %s75
      %p81 = scmp.eq.s32.totalorder %s15, 0
      %p82 = por %p80, %p81
      %p83 = scmp.ne.s32.totalorder %s72, %s75
      %p84 = scmp.eq.s32.totalorder %s20, 1
      %p85 = por %p83, %p84
      %p86 = scmp.ne.s32.totalorder %s75, %s76
      %p87 = scmp.eq.s32.totalorder %s20, 0
      %p88 = por %p86, %p87
      %p89 = scmp.ne.s32.totalorder %s75, %s76
      %p90 = scmp.eq.s32.totalorder %s21, 1
      %p91 = por %p89, %p90
      %p93 = scmp.ne.s32.totalorder %s76, %s92
      %p94 = scmp.eq.s32.totalorder %s21, 0
      %p95 = por %p93, %p94
      %p96 = scmp.le.s32.totalorder 1, %s15
      %p97 = scmp.lt.s32.totalorder %s15, 3
      %p98 = pnand %p96, %p97
      %p99 = pneg %p98
      // Predicated region
      $region9: #{tpu_custom_call.1} parent=5 // pred_check
        _
      $region10: #{tpu_custom_call.1} parent=5 // pred_check_branch
        %101 = sbr.rel (%p98) target = $region12
      $region11: #{tpu_custom_call.1} parent=5 // pred_region
        %s102 = ssub.s32 %s15, 1
        // Predicated region
        $region13: #{tpu_custom_call.1} parent=11 // pred_check
          %p103 = pneg %p62
        $region14: #{tpu_custom_call.1} parent=11 // pred_check_branch
          %105 = sbr.rel (%p103) target = $region16
        $region15: #{tpu_custom_call.1} parent=11 // pred_region
          %107 = vsyncadd [#allocation7], 0
          %s109 = sshll.u32 %s1, 4
          %s110 = int_to_ptr.hbm [resolvable:$true] %s109
          %s111 = sshll.u32 [#allocation6], 4
          %s112 = int_to_ptr.vmem [resolvable:$true] %s111
          %114 = dma.hbm_to_vmem [thread:$0]  %s110, 64, %s112, [#allocation7]
        $region16: #{tpu_custom_call.1} parent=11 // pred_fallthru
          _
      $region12: #{tpu_custom_call.1} parent=5 // pred_fallthru
        _
      %p115 = scmp.lt.s32.totalorder %s15, 2
      // Predicated region
      $region17: #{tpu_custom_call.1} parent=5 // pred_check
        %p116 = pneg %p115
      $region18: #{tpu_custom_call.1} parent=5 // pred_check_branch
        %118 = sbr.rel (%p116) target = $region20
      $region19: #{tpu_custom_call.1} parent=5 // pred_region
        // Predicated region
        $region21: #{tpu_custom_call.1} parent=19 // pred_check
          %p119 = pneg %p35
        $region22: #{tpu_custom_call.1} parent=19 // pred_check_branch
          %121 = sbr.rel (%p119) target = $region24
        $region23: #{tpu_custom_call.1} parent=19 // pred_region
          %s122 = sand.u32 %s25, 1
          %s123 = scalar_lea.sflag [#allocation4], %s122
          %s124 = sand.u32 %s25, 1
          %s125 = smul.addr %s124, 8
          %s126 = scalar_lea.vmem [#allocation3], %s125
          %s127 = smul.u32 2, %s15
          %129 = vsyncadd %s123, 0
          %s130 = smul.addr %s127, 4
          %s131 = scalar_lea.hbm %s0, %s130
          %s133 = sshll.u32 %s131, 4
          %s134 = int_to_ptr.hbm [resolvable:$true] %s133
          %s135 = sshll.u32 %s126, 4
          %s136 = int_to_ptr.vmem [resolvable:$true] %s135
          %138 = dma.hbm_to_vmem [thread:$0]  %s134, 128, %s136, %s123
        $region24: #{tpu_custom_call.1} parent=19 // pred_fallthru
          _
      $region20: #{tpu_custom_call.1} parent=5 // pred_fallthru
        _
      %p139 = scmp.le.s32.totalorder 1, %s15
      %p140 = scmp.lt.s32.totalorder %s15, 3
      %p141 = pnand %p139, %p140
      %p142 = pneg %p141
      // Predicated region
      $region25: #{tpu_custom_call.1} parent=5 // pred_check
        _
      $region26: #{tpu_custom_call.1} parent=5 // pred_check_branch
        %144 = sbr.rel (%p141) target = $region28
      $region27: #{tpu_custom_call.1} parent=5 // pred_region
        %s145 = ssub.s32 %s15, 1
        %s146 = sand.u32 %s28, 1
        %s147 = scalar_lea.sflag [#allocation4], %s146
        %s148 = sand.u32 %s28, 1
        %s149 = smul.addr %s148, 8
        %s150 = scalar_lea.vmem [#allocation3], %s149
        // Predicated region
        $region29: #{tpu_custom_call.1} parent=27 // pred_check
          %p151 = pneg %p41
        $region30: #{tpu_custom_call.1} parent=27 // pred_check_branch
          %153 = sbr.rel (%p151) target = $region32
        $region31: #{tpu_custom_call.1} parent=27 // pred_region
          %155 = dma.done %s147, 128
        $region32: #{tpu_custom_call.1} parent=27 // pred_fallthru
          _
        // Predicated region
        $region33: #{tpu_custom_call.1} parent=27 // pred_check
          %p156 = pneg %p62
        $region34: #{tpu_custom_call.1} parent=27 // pred_check_branch
          %158 = sbr.rel (%p156) target = $region36
        $region35: #{tpu_custom_call.1} parent=27 // pred_region
          %160 = dma.done [#allocation7], 64
        $region36: #{tpu_custom_call.1} parent=27 // pred_fallthru
          _
        %s161 = sand.u32 %s28, 1
        %s162 = scalar_lea.sflag [#allocation4], %s161
        %s163 = sand.u32 %s28, 1
        %s164 = smul.addr %s163, 8
        %s165 = scalar_lea.vmem [#allocation3], %s164
        %p166 = pneg %p41
        %p167 = pneg %p38
        %p168 = pneg %p62
        %p169 = pneg %p59
        %p170 = pneg %p88
        %p171 = pneg %p85
        %s172 = sand.u32 %s75, 1
        %s173 = scalar_lea.sflag [#allocation5], %s172
        %s174 = sand.u32 %s75, 1
        %s175 = smul.addr %s174, 16
        %s176 = scalar_lea.vmem [#allocation8], %s175
        %s177 = smul.u32 2, %s20
        %s178 = smul.u32 2, %s20
        %v180 = vld [vmem:[%s150] sm:$0xff]
        %v181 = vlaneseq
        %v182 = vand.u32 %v181, 127
        %v183 = vadd.s32 %v182, 128
        %v184 = vand.u32 %v182, 255
        %v185 = vand.u32 %v183, 255
        %v186 = vand.u32 %v184, 15
        %v187 = vand.u32 %v185, 15
        %v188 = vshra.s32 %v184, 4
        %v189 = vshra.s32 %v185, 4
        %vm190 = vcmp.ge.s32.totalorder %v188, 1
        %vm191 = vcmp.ge.s32.totalorder %v189, 1
        %vm192 = vcmp.lt.s32.totalorder %v188, 15
        %vm193 = vcmp.lt.s32.totalorder %v189, 15
        %vm194 = vcmp.ge.s32.totalorder %v186, 1
        %vm195 = vcmp.ge.s32.totalorder %v187, 1
        %vm196 = vcmp.lt.s32.totalorder %v186, 15
        %vm197 = vcmp.lt.s32.totalorder %v187, 15
        %v198 = vlaneseq
        %vm199 = vcmp.ge.s32.totalorder %v198, 0
        %vm200 = vcmp.lt.s32.totalorder %v198, 256
        %vm201 = vmand %vm199, %vm200
        %s202 = scalar_lea.vmem [#allocation2], 68
        %203 = vst.msk [vmem:[%s202] ss:$8 sm:$0x3] %vm201, 1.0
        %204 = vst.msk [vmem:[%s202] ss:$8 sm:$0x0] %vm201, 1.0
        %206 = vst [vmem:[#allocation1] ss:$2 sm:$0xff] %v180
        %v207 = vld.sshfl [vmem:[#allocation1] sm:$0xff pattern:$0x75316420]
        %v208 = vld.sshfl [vmem:[#allocation1 + $0x8] sm:$0xff pattern:$0x75316420]
        %211 = vrot.lane.b32.xlu0 %v207, 17
        %v212 = vpop.permute.xlu0 %211
        %213 = vrot.lane.b32.xlu0 %v208, 17
        %v214 = vpop.permute.xlu0 %213
        %vm215 = vcmp.lt.s32.totalorder %v182, 17
        %v216 = vsel %vm215, %v212, %v214
        %v217 = vsel %vm215, %v214, %v212
        %vm218 = vmand %vm190, %vm194
        %vm219 = vmand %vm191, %vm195
        %v220 = vsel %vm218, 1, 0
        %v221 = vsel %vm219, 1, 0
        %vm222 = vcmp.eq.s32.totalorder %v220, 1
        %vm223 = vcmp.eq.s32.totalorder %v221, 1
        %v224 = vsel %vm222, %v217, 0.0
        %v225 = vsel %vm223, %v216, 0.0
        %226 = vst [vmem:[#allocation2] sm:$0xf] %v224
        %227 = vst [vmem:[#allocation2 + $0x8] sm:$0xf] %v225
        %228 = vst [vmem:[#allocation1] ss:$2 sm:$0xff] %v180
        %v229 = vld.sshfl [vmem:[#allocation1] sm:$0xff pattern:$0x75316420]
        %v230 = vld.sshfl [vmem:[#allocation1 + $0x8] sm:$0xff pattern:$0x75316420]
        %233 = vrot.lane.b32.xlu0 %v229, 16
        %v234 = vpop.permute.xlu0 %233
        %235 = vrot.lane.b32.xlu0 %v230, 16
        %v236 = vpop.permute.xlu0 %235
        %vm237 = vcmp.lt.s32.totalorder %v182, 16
        %v238 = vsel %vm237, %v234, %v236
        %v239 = vsel %vm237, %v236, %v234
        %v240 = vsel %vm190, 1, 0
        %v241 = vsel %vm191, 1, 0
        %vm242 = vcmp.eq.s32.totalorder %v240, 1
        %vm243 = vcmp.eq.s32.totalorder %v241, 1
        %v244 = vsel %vm242, %v239, 0.0
        %v245 = vsel %vm243, %v238, 0.0
        %v248 = vrot.slane %v244, 4
        %v249 = vrot.slane %v245, 4
        %252 = vst [vmem:[#allocation2] sm:$0xf0] %v248
        %253 = vst [vmem:[#allocation2 + $0x8] sm:$0xf0] %v249
        %254 = vst [vmem:[#allocation1] ss:$2 sm:$0xff] %v180
        %v255 = vld.sshfl [vmem:[#allocation1] sm:$0xff pattern:$0x75316420]
        %v256 = vld.sshfl [vmem:[#allocation1 + $0x8] sm:$0xff pattern:$0x75316420]
        %259 = vrot.lane.b32.xlu0 %v255, 15
        %v260 = vpop.permute.xlu0 %259
        %261 = vrot.lane.b32.xlu0 %v256, 15
        %v262 = vpop.permute.xlu0 %261
        %vm263 = vcmp.lt.s32.totalorder %v182, 15
        %v264 = vsel %vm263, %v260, %v262
        %v265 = vsel %vm263, %v262, %v260
        %vm266 = vmand %vm190, %vm196
        %vm267 = vmand %vm191, %vm197
        %v268 = vsel %vm266, 1, 0
        %v269 = vsel %vm267, 1, 0
        %vm270 = vcmp.eq.s32.totalorder %v268, 1
        %vm271 = vcmp.eq.s32.totalorder %v269, 1
        %v272 = vsel %vm270, %v265, 0.0
        %v273 = vsel %vm271, %v264, 0.0
        %274 = vst [vmem:[#allocation2 + $0x10] sm:$0xf] %v272
        %275 = vst [vmem:[#allocation2 + $0x18] sm:$0xf] %v273
        %276 = vst [vmem:[#allocation1] ss:$2 sm:$0xff] %v180
        %v277 = vld.sshfl [vmem:[#allocation1] sm:$0xff pattern:$0x75316420]
        %v278 = vld.sshfl [vmem:[#allocation1 + $0x8] sm:$0xff pattern:$0x75316420]
        %281 = vrot.lane.b32.xlu0 %v277, 1
        %v282 = vpop.permute.xlu0 %281
        %283 = vrot.lane.b32.xlu0 %v278, 1
        %v284 = vpop.permute.xlu0 %283
        %vm285 = vcmp.lt.s32.totalorder %v182, 1
        %v286 = vsel %vm285, %v282, %v284
        %v287 = vsel %vm285, %v284, %v282
        %v288 = vsel %vm194, 1, 0
        %v289 = vsel %vm195, 1, 0
        %vm290 = vcmp.eq.s32.totalorder %v288, 1
        %vm291 = vcmp.eq.s32.totalorder %v289, 1
        %v292 = vsel %vm290, %v287, 0.0
        %v293 = vsel %vm291, %v286, 0.0
        %v296 = vrot.slane %v292, 4
        %v297 = vrot.slane %v293, 4
        %300 = vst [vmem:[#allocation2 + $0x10] sm:$0xf0] %v296
        %301 = vst [vmem:[#allocation2 + $0x18] sm:$0xf0] %v297
        %302 = vst [vmem:[#allocation1] ss:$2 sm:$0xff] %v180
        %v303 = vld.sshfl [vmem:[#allocation1] sm:$0xff pattern:$0x75316420]
        %v304 = vld.sshfl [vmem:[#allocation1 + $0x8] sm:$0xff pattern:$0x75316420]
        %307 = vst [vmem:[#allocation2 + $0x20] sm:$0xf] %v303
        %308 = vst [vmem:[#allocation2 + $0x28] sm:$0xf] %v304
        %309 = vst [vmem:[#allocation1] ss:$2 sm:$0xff] %v180
        %v310 = vld.sshfl [vmem:[#allocation1] sm:$0xff pattern:$0x75316420]
        %v311 = vld.sshfl [vmem:[#allocation1 + $0x8] sm:$0xff pattern:$0x75316420]
        %314 = vrot.lane.b32.xlu0 %v310, 127
        %v315 = vpop.permute.xlu0 %314
        %316 = vrot.lane.b32.xlu0 %v311, 127
        %v317 = vpop.permute.xlu0 %316
        %vm318 = vcmp.lt.s32.totalorder %v182, 127
        %v319 = vsel %vm318, %v315, %v317
        %v320 = vsel %vm318, %v317, %v315
        %v321 = vsel %vm196, 1, 0
        %v322 = vsel %vm197, 1, 0
        %vm323 = vcmp.eq.s32.totalorder %v321, 1
        %vm324 = vcmp.eq.s32.totalorder %v322, 1
        %v325 = vsel %vm323, %v319, 0.0
        %v326 = vsel %vm324, %v320, 0.0
        %v329 = vrot.slane %v325, 4
        %v330 = vrot.slane %v326, 4
        %333 = vst [vmem:[#allocation2 + $0x20] sm:$0xf0] %v329
        %334 = vst [vmem:[#allocation2 + $0x28] sm:$0xf0] %v330
        %335 = vst [vmem:[#allocation1] ss:$2 sm:$0xff] %v180
        %v336 = vld.sshfl [vmem:[#allocation1] sm:$0xff pattern:$0x75316420]
        %v337 = vld.sshfl [vmem:[#allocation1 + $0x8] sm:$0xff pattern:$0x75316420]
        %340 = vrot.lane.b32.xlu0 %v336, 113
        %v341 = vpop.permute.xlu0 %340
        %342 = vrot.lane.b32.xlu0 %v337, 113
        %v343 = vpop.permute.xlu0 %342
        %vm344 = vcmp.lt.s32.totalorder %v182, 113
        %v345 = vsel %vm344, %v341, %v343
        %v346 = vsel %vm344, %v343, %v341
        %vm347 = vmand %vm192, %vm194
        %vm348 = vmand %vm193, %vm195
        %v349 = vsel %vm347, 1, 0
        %v350 = vsel %vm348, 1, 0
        %vm351 = vcmp.eq.s32.totalorder %v349, 1
        %vm352 = vcmp.eq.s32.totalorder %v350, 1
        %v353 = vsel %vm351, %v345, 0.0
        %v354 = vsel %vm352, %v346, 0.0
        %355 = vst [vmem:[#allocation2 + $0x30] sm:$0xf] %v353
        %356 = vst [vmem:[#allocation2 + $0x38] sm:$0xf] %v354
        %357 = vst [vmem:[#allocation1] ss:$2 sm:$0xff] %v180
        %v358 = vld.sshfl [vmem:[#allocation1] sm:$0xff pattern:$0x75316420]
        %v359 = vld.sshfl [vmem:[#allocation1 + $0x8] sm:$0xff pattern:$0x75316420]
        %362 = vrot.lane.b32.xlu0 %v358, 112
        %v363 = vpop.permute.xlu0 %362
        %364 = vrot.lane.b32.xlu0 %v359, 112
        %v365 = vpop.permute.xlu0 %364
        %vm366 = vcmp.lt.s32.totalorder %v182, 112
        %v367 = vsel %vm366, %v363, %v365
        %v368 = vsel %vm366, %v365, %v363
        %v369 = vsel %vm192, 1, 0
        %v370 = vsel %vm193, 1, 0
        %vm371 = vcmp.eq.s32.totalorder %v369, 1
        %vm372 = vcmp.eq.s32.totalorder %v370, 1
        %v373 = vsel %vm371, %v367, 0.0
        %v374 = vsel %vm372, %v368, 0.0
        %v377 = vrot.slane %v373, 4
        %v378 = vrot.slane %v374, 4
        %381 = vst [vmem:[#allocation2 + $0x30] sm:$0xf0] %v377
        %382 = vst [vmem:[#allocation2 + $0x38] sm:$0xf0] %v378
        %383 = vst [vmem:[#allocation1] ss:$2 sm:$0xff] %v180
        %v384 = vld.sshfl [vmem:[#allocation1] sm:$0xff pattern:$0x75316420]
        %v385 = vld.sshfl [vmem:[#allocation1 + $0x8] sm:$0xff pattern:$0x75316420]
        %388 = vrot.lane.b32.xlu0 %v384, 111
        %v389 = vpop.permute.xlu0 %388
        %390 = vrot.lane.b32.xlu0 %v385, 111
        %v391 = vpop.permute.xlu0 %390
        %vm392 = vcmp.lt.s32.totalorder %v182, 111
        %v393 = vsel %vm392, %v389, %v391
        %v394 = vsel %vm392, %v391, %v389
        %vm395 = vmand %vm192, %vm196
        %vm396 = vmand %vm193, %vm197
        %v397 = vsel %vm395, 1, 0
        %v398 = vsel %vm396, 1, 0
        %vm399 = vcmp.eq.s32.totalorder %v397, 1
        %vm400 = vcmp.eq.s32.totalorder %v398, 1
        %v401 = vsel %vm399, %v393, 0.0
        %v402 = vsel %vm400, %v394, 0.0
        %403 = vst [vmem:[#allocation2 + $0x40] sm:$0xf] %v401
        %404 = vst [vmem:[#allocation2 + $0x48] sm:$0xf] %v402
        %v405 = vld [vmem:[#allocation2] sm:$0xff]
        %v406 = vld [vmem:[#allocation2 + $0x8] sm:$0xff]
        %v407 = vld [vmem:[#allocation2 + $0x10] sm:$0xff]
        %v408 = vld [vmem:[#allocation2 + $0x18] sm:$0xff]
        %v409 = vld [vmem:[#allocation2 + $0x20] sm:$0xff]
        %v410 = vld [vmem:[#allocation2 + $0x28] sm:$0xff]
        %v411 = vld [vmem:[#allocation2 + $0x30] sm:$0xff]
        %v412 = vld [vmem:[#allocation2 + $0x38] sm:$0xff]
        %v413 = vld [vmem:[#allocation2 + $0x40] sm:$0x1f]
        %v414 = vld [vmem:[#allocation2 + $0x48] sm:$0x1f]
        %v415 = vpack.c.bf16 %v407, %v405
        %v416 = vpack.c.bf16 %v408, %v406
        %v417 = vpack.c.bf16 %v411, %v409
        %v418 = vpack.c.bf16 %v412, %v410
        %v419 = vpack.c.bf16 %v413, %v413
        %v420 = vpack.c.bf16 %v414, %v414
        %v421 = vld [vmem:[#allocation6] sm:$0xf]
        %vm422 = vcmask 302080
        %v424 = vsel %vm422, %v421, 0
        %vm426 = vcmask 1041408
        %vm427 = vcmask 1042432
        %v428 = vsel %vm426, 4294967295, 65535
        %v429 = vsel %vm427, %v428, 0
        %v431 = vand.u32 %v419, %v429
        %v434 = vand.u32 %v420, %v429
        %436 = vmatpush.bf16.msra.mxu0 0
        %437 = vmatpush.bf16.msra.mxu0 0
        %438 = vmatpush.bf16.msra.mxu0 0
        %439 = vmatpush.bf16.msra.mxu0 0
        %440 = vmatpush.bf16.msra.mxu0 0
        %441 = vmatpush.bf16.msra.mxu0 %v431
        %442 = vmatpush.bf16.msra.mxu0 %v417
        %443 = vmatpush.bf16.msra.mxu0 %v415
        %444 = vmatmul.bf16.gmra.mxu0 %v424
        %v445 = vpop.f32.mrf.mxu0
        %v446 = vadd.f32 0.0, %v445
        %v447 = vpop.f32.mrf.mxu0
        %448 = vdwg.mxu0
        %449 = vmatpush.bf16.msra.mxu0 0
        %450 = vmatpush.bf16.msra.mxu0 0
        %451 = vmatpush.bf16.msra.mxu0 0
        %452 = vmatpush.bf16.msra.mxu0 0
        %453 = vmatpush.bf16.msra.mxu0 0
        %454 = vmatpush.bf16.msra.mxu0 %v434
        %455 = vmatpush.bf16.msra.mxu0 %v418
        %456 = vmatpush.bf16.msra.mxu0 %v416
        %457 = vmatmul.bf16.gmra.mxu0 %v424
        %v458 = vpop.f32.mrf.mxu0
        %v459 = vadd.f32 0.0, %v458
        %v460 = vpop.f32.mrf.mxu0
        %461 = vdwg.mxu0
        %462 = vst [vmem:[%s176] sm:$0xff] %v446
        %463 = vst [vmem:[%s176 + $0x8] sm:$0xff] %v459
        %s464 = sand.u32 %s75, 1
        %s465 = scalar_lea.sflag [#allocation5], %s464
        %s466 = sand.u32 %s75, 1
        %s467 = smul.addr %s466, 16
        %s468 = scalar_lea.vmem [#allocation8], %s467
        // Predicated region
        $region37: #{tpu_custom_call.1} parent=27 // pred_check
          %p469 = pneg %p85
        $region38: #{tpu_custom_call.1} parent=27 // pred_check_branch
          %471 = sbr.rel (%p469) target = $region40
        $region39: #{tpu_custom_call.1} parent=27 // pred_region
          %s472 = smul.u32 2, %s20
          %474 = vsyncadd %s465, 0
          %s475 = smul.addr %s472, 8
          %s476 = scalar_lea.hbm %s2, %s475
          %s478 = sshll.u32 %s468, 4
          %s479 = int_to_ptr.vmem [resolvable:$true] %s478
          %s480 = sshll.u32 %s476, 4
          %s481 = int_to_ptr.hbm [resolvable:$true] %s480
          %483 = dma.vmem_to_hbm [thread:$0]  %s479, 256, %s481, %s465
        $region40: #{tpu_custom_call.1} parent=27 // pred_fallthru
          _
      $region28: #{tpu_custom_call.1} parent=5 // pred_fallthru
        _
      %p484 = scmp.le.s32.totalorder 2, %s15
      // Predicated region
      $region41: #{tpu_custom_call.1} parent=5 // pred_check
        %p485 = pneg %p484
      $region42: #{tpu_custom_call.1} parent=5 // pred_check_branch
        %487 = sbr.rel (%p485) target = $region44
      $region43: #{tpu_custom_call.1} parent=5 // pred_region
        %s488 = ssub.s32 %s15, 2
        // Predicated region
        $region45: #{tpu_custom_call.1} parent=43 // pred_check
          %p489 = pneg %p91
        $region46: #{tpu_custom_call.1} parent=43 // pred_check_branch
          %491 = sbr.rel (%p489) target = $region48
        $region47: #{tpu_custom_call.1} parent=43 // pred_region
          %s492 = sand.u32 %s76, 1
          %s493 = scalar_lea.sflag [#allocation5], %s492
          %s494 = sand.u32 %s76, 1
          %s495 = smul.addr %s494, 16
          %s496 = scalar_lea.vmem [#allocation8], %s495
          %498 = dma.done %s493, 256
        $region48: #{tpu_custom_call.1} parent=43 // pred_fallthru
          _
      $region44: #{tpu_custom_call.1} parent=5 // pred_fallthru
        _
    $region6: #{tpu_custom_call.1} parent=1 // loop_footer
      %s19 = sadd.s32 1, %s15
    $region7: #{tpu_custom_call.1} parent=1 // loop_footer_branch
      %14 = sbr.rel target = $region3
    $region8: #{tpu_custom_call.1} parent=1 // loop_exit
      _
    %499 = vsyncpa [#allocation4], 1
    %s500 = scalar_lea.sflag [#allocation4], 1
    %501 = vsyncpa %s500, 1
    %502 = vsyncpa [#allocation7], 1
    %503 = vsyncpa [#allocation5], 1
    %s504 = scalar_lea.sflag [#allocation5], 1
    %505 = vsyncpa %s504, 1

</llo_original>
